<compile_context>
chip_gen: v6e
topology: v6e:2x2x1
jax: 0.10.0
libtpu: 0.0.40
codegen_flags: <defaults>
</compile_context>

<pallas_src>
import functools

import jax
import jax.numpy as jnp
from jax.experimental import pallas as pl
from jax.experimental.pallas import tpu as pltpu


def _round_up(n, m):
    return ((n + m - 1) // m) * m


def mlp_kernel(slopes_ref,              # SMEM: [2] PReLU slopes (a1, a2)
               x_ref,                   # VMEM: [TILE_B, in_dim]      (f32)
               w1_ref, b1_ref,          # VMEM: [in_dim, HID_P], [1, HID_P]
               w2_ref, b2_ref,          # VMEM: [HID_P, HID_P], [1, HID_P]
               w3_ref, b3_ref,          # VMEM: [HID_P, out_dim], [1, out_dim]
               o_ref,                   # VMEM: [TILE_B, out_dim]     (f32)
               *, matmul_dtype):
    a1 = slopes_ref[0]
    a2 = slopes_ref[1]

    x = x_ref[...].astype(matmul_dtype)

    # ---- Linear 1 + (Dropout = identity at eval) + PReLU (f32 elementwise) ----
    h1 = jnp.dot(x, w1_ref[...], preferred_element_type=jnp.float32) + b1_ref[...]
    h1 = jnp.where(h1 > 0, h1, a1 * h1)

    # ---- Linear 2 + (Dropout = identity at eval) + PReLU (f32 elementwise) ----
    h2 = jnp.dot(h1.astype(matmul_dtype), w2_ref[...],
                 preferred_element_type=jnp.float32) + b2_ref[...]
    h2 = jnp.where(h2 > 0, h2, a2 * h2)

    # ---- Linear 3 ----
    out = jnp.dot(h2.astype(matmul_dtype), w3_ref[...],
                  preferred_element_type=jnp.float32) + b3_ref[...]
    o_ref[...] = out.astype(o_ref.dtype)


def prepare_params(params, matmul_dtype=jnp.bfloat16):
    """One-time weight prep: transpose, zero-pad the hidden dim to 128 lanes, cast.

    Padding the hidden (lane) dim is numerically exact: zero weight rows/cols contribute
    nothing and PReLU(0) = 0.  Input / output feature dims are left unpadded.
    """
    hid, in_dim = params["w1"].shape
    out_dim = params["w3"].shape[0]
    HID_P = _round_up(hid, 128)
    f32 = jnp.float32

    w1t = jnp.zeros((in_dim, HID_P), matmul_dtype).at[:, :hid].set(
        params["w1"].T.astype(matmul_dtype))
    w2t = jnp.zeros((HID_P, HID_P), matmul_dtype).at[:hid, :hid].set(
        params["w2"].T.astype(matmul_dtype))
    w3t = jnp.zeros((HID_P, out_dim), matmul_dtype).at[:hid, :].set(
        params["w3"].T.astype(matmul_dtype))
    b1 = jnp.zeros((1, HID_P), f32).at[0, :hid].set(params["b1"].astype(f32))
    b2 = jnp.zeros((1, HID_P), f32).at[0, :hid].set(params["b2"].astype(f32))
    b3 = params["b3"].astype(f32).reshape(1, out_dim)
    slopes = jnp.stack([params["a1"].reshape(()), params["a2"].reshape(())]).astype(f32)

    return {
        "w1t": w1t, "b1": b1, "w2t": w2t, "b2": b2, "w3t": w3t, "b3": b3,
        "slopes": slopes, "in_dim": in_dim, "hid": hid, "hid_p": HID_P,
        "out_dim": out_dim, "matmul_dtype": matmul_dtype,
    }


def mlp_forward(x, prep, *, batch_tile=1024):
    """x: [B, input_dim] float32.  prep: output of prepare_params()."""
    B, in_dim = x.shape
    assert in_dim == prep["in_dim"], "input feature dim mismatch"
    HID_P = prep["hid_p"]
    out_dim = prep["out_dim"]
    matmul_dtype = prep["matmul_dtype"]
    f32 = jnp.float32

    # Batch tile: multiple of 8 (sublane), capped by batch_tile; small batches get a
    # balanced >= 2-tile split so both v7x TensorCores have work under "parallel".
    TILE_B = int(min(batch_tile, max(8, _round_up(pl.cdiv(B, 2), 8))))
    grid = (pl.cdiv(B, TILE_B),)   # ragged last block handled by Pallas masking

    const = lambda i: (0, 0)       # weights / biases: VMEM-resident, never re-fetched
    batch_map = lambda i: (i, 0)   # activations / output: tiled along batch

    kernel = functools.partial(mlp_kernel, matmul_dtype=matmul_dtype)

    out = pl.pallas_call(
        kernel,
        out_shape=jax.ShapeDtypeStruct((B, out_dim), f32),
        grid_spec=pltpu.PrefetchScalarGridSpec(
            num_scalar_prefetch=0,
            grid=grid,
            in_specs=[
                pl.BlockSpec(memory_space=pltpu.MemorySpace.SMEM),    # slopes
                pl.BlockSpec((TILE_B, in_dim), batch_map),            # x (unpadded)
                pl.BlockSpec((in_dim, HID_P), const),                 # w1t
                pl.BlockSpec((1, HID_P), const),                      # b1
                pl.BlockSpec((HID_P, HID_P), const),                  # w2t
                pl.BlockSpec((1, HID_P), const),                      # b2
                pl.BlockSpec((HID_P, out_dim), const),                # w3t
                pl.BlockSpec((1, out_dim), const),                    # b3
            ],
            out_specs=pl.BlockSpec((TILE_B, out_dim), batch_map),     # unpadded output
        ),
        compiler_params=pltpu.CompilerParams(
            dimension_semantics=("parallel",),    # shard batch tiles across TCs (v7x)
        ),
    )(prep["slopes"], x.astype(f32), prep["w1t"], prep["b1"],
      prep["w2t"], prep["b2"], prep["w3t"], prep["b3"])

    return out


def init_params(key, input_dim, hidden_dim, output_dim):
    """Deterministic init mimicking PyTorch Linear default (uniform +/- 1/sqrt(fan_in))."""
    ks = jax.random.split(key, 6)

    def lin(kw, kb, fan_in, fan_out):
        bound = 1.0 / jnp.sqrt(fan_in)
        w = jax.random.uniform(kw, (fan_out, fan_in), jnp.float32, -bound, bound)
        b = jax.random.uniform(kb, (fan_out,), jnp.float32, -bound, bound)
        return w, b

    w1, b1 = lin(ks[0], ks[1], input_dim, hidden_dim)
    w2, b2 = lin(ks[2], ks[3], hidden_dim, hidden_dim)
    w3, b3 = lin(ks[4], ks[5], hidden_dim, output_dim)
    return {
        "w1": w1, "b1": b1, "a1": jnp.array([0.25], jnp.float32),
        "w2": w2, "b2": b2, "a2": jnp.array([0.25], jnp.float32),
        "w3": w3, "b3": b3,
    }


def mlp_reference(x, p):
    """Pure-JAX eval-mode reference."""
    def prelu(h, a):
        return jnp.where(h > 0, h, a * h)
    h = prelu(x @ p["w1"].T + p["b1"], p["a1"][0])
    h = prelu(h @ p["w2"].T + p["b2"], p["a2"][0])
    return h @ p["w3"].T + p["b3"]


if __name__ == "__main__":
    # LunarLander-ish sizes: obs dim 8, hidden 32, actions 4.
    input_dim, hidden_dim, output_dim = 8, 32, 4

    key = jax.random.PRNGKey(0)
    kx, kx2, kp = jax.random.split(key, 3)
    params = init_params(kp, input_dim, hidden_dim, output_dim)

    # One-time weight prep (hoisted out of the per-call path).
    prep_f32 = prepare_params(params, matmul_dtype=jnp.float32)
    prep_bf16 = prepare_params(params, matmul_dtype=jnp.bfloat16)   # default fast path

    # --- small batch, f32 matmul operands (exact vs reference) ---
    batch = 8
    x = jax.random.normal(kx, (batch, input_dim), jnp.float32)
    out = jax.block_until_ready(mlp_forward(x, prep_f32))
    ref = mlp_reference(x, params)
    assert out.shape == (batch, output_dim)
    assert jnp.allclose(out, ref, atol=1e-5, rtol=1e-5), "f32 mismatch vs reference"

    # --- non-multiple batch spanning >1 grid tile (ragged last block) ---
    batch2 = 300
    x2 = jax.random.normal(kx2, (batch2, input_dim), jnp.float32)
    out2 = jax.block_until_ready(mlp_forward(x2, prep_f32))
    ref2 = mlp_reference(x2, params)
    assert out2.shape == (batch2, output_dim)
    assert jnp.allclose(out2, ref2, atol=1e-5, rtol=1e-5), "gridded f32 mismatch"

    # --- default bf16 matmul operands (single-pass MXU on v5e/v6e/v7x), f32 accumulation ---
    out_bf16 = jax.block_until_ready(mlp_forward(x2, prep_bf16))
    assert out_bf16.shape == (batch2, output_dim)
    assert jnp.allclose(out_bf16, ref2, atol=5e-2, rtol=5e-2), "bf16 path diverged"

    print("KERNEL_OK")
</pallas_src>

<mosaic_0001>
module attributes {stable_mosaic.version = 11 : i64} {
  func.func @mlp_kernel(%arg0: i32, %arg1: memref<2xf32, #tpu.memory_space<smem>>, %arg2: memref<8x8xf32, #tpu.memory_space<vmem>>, %arg3: memref<8x128xf32, #tpu.memory_space<vmem>>, %arg4: memref<1x128xf32, #tpu.memory_space<vmem>>, %arg5: memref<128x128xf32, #tpu.memory_space<vmem>>, %arg6: memref<1x128xf32, #tpu.memory_space<vmem>>, %arg7: memref<128x4xf32, #tpu.memory_space<vmem>>, %arg8: memref<1x4xf32, #tpu.memory_space<vmem>>, %arg9: memref<8x4xf32, #tpu.memory_space<vmem>>) attributes {dimension_semantics = [#tpu.dimension_semantics<parallel>], iteration_bounds = array<i64: 1>, scalar_prefetch = 0 : i64, scratch_operands = 0 : i64, tpu.core_type = #tpu.core_type<tc>, window_params = [{transform_indices = @transform_0, window_bounds = array<i64: 2>}, {transform_indices = @transform_1, window_bounds = array<i64: 8, 8>}, {pipeline_mode = #tpu.pipeline_mode<synchronous>, transform_indices = @transform_2, window_bounds = array<i64: 8, 128>}, {pipeline_mode = #tpu.pipeline_mode<synchronous>, transform_indices = @transform_3, window_bounds = array<i64: 1, 128>}, {pipeline_mode = #tpu.pipeline_mode<synchronous>, transform_indices = @transform_4, window_bounds = array<i64: 128, 128>}, {pipeline_mode = #tpu.pipeline_mode<synchronous>, transform_indices = @transform_5, window_bounds = array<i64: 1, 128>}, {pipeline_mode = #tpu.pipeline_mode<synchronous>, transform_indices = @transform_6, window_bounds = array<i64: 128, 4>}, {pipeline_mode = #tpu.pipeline_mode<synchronous>, transform_indices = @transform_7, window_bounds = array<i64: 1, 4>}, {transform_indices = @transform_8, window_bounds = array<i64: 8, 4>}]} {
    %c0 = arith.constant 0 : index
    %0 = memref.load %arg1[%c0] : memref<2xf32, #tpu.memory_space<smem>>
    %c1 = arith.constant 1 : index
    %1 = memref.load %arg1[%c1] : memref<2xf32, #tpu.memory_space<smem>>
    %c0_0 = arith.constant 0 : index
    %c0_1 = arith.constant 0 : index
    %2 = vector.load %arg2[%c0_0, %c0_1] : memref<8x8xf32, #tpu.memory_space<vmem>>, vector<8x8xf32>
    %c0_2 = arith.constant 0 : index
    %c0_3 = arith.constant 0 : index
    %3 = vector.load %arg3[%c0_2, %c0_3] : memref<8x128xf32, #tpu.memory_space<vmem>>, vector<8x128xf32>
    %cst = arith.constant dense<0.000000e+00> : vector<8x128xf32>
    %4 = tpu.matmul %2, %3, %cst {dimension_numbers = #tpu.dot_dimension_numbers<[1], [0], [0], [1], [0, 0, 1, 1], [], []>} : vector<8x8xf32>, vector<8x128xf32>, vector<8x128xf32> -> vector<8x128xf32>
    %c0_4 = arith.constant 0 : index
    %c0_5 = arith.constant 0 : index
    %5 = vector.load %arg4[%c0_4, %c0_5] : memref<1x128xf32, #tpu.memory_space<vmem>>, vector<1x128xf32>
    %6 = vector.broadcast %5 : vector<1x128xf32> to vector<8x128xf32>
    %7 = arith.addf %4, %6 : vector<8x128xf32>
    %cst_6 = arith.constant 0.000000e+00 : f32
    %8 = vector.broadcast %cst_6 : f32 to vector<8x128xf32>
    %9 = arith.cmpf ogt, %7, %8 : vector<8x128xf32>
    %10 = vector.broadcast %0 : f32 to vector<8x128xf32>
    %11 = arith.mulf %10, %7 : vector<8x128xf32>
    %12 = arith.select %9, %7, %11 : vector<8x128xi1>, vector<8x128xf32>
    %c0_7 = arith.constant 0 : index
    %c0_8 = arith.constant 0 : index
    %13 = vector.load %arg5[%c0_7, %c0_8] : memref<128x128xf32, #tpu.memory_space<vmem>>, vector<128x128xf32>
    %cst_9 = arith.constant dense<0.000000e+00> : vector<8x128xf32>
    %14 = tpu.matmul %12, %13, %cst_9 {dimension_numbers = #tpu.dot_dimension_numbers<[1], [0], [0], [1], [0, 0, 1, 1], [], []>} : vector<8x128xf32>, vector<128x128xf32>, vector<8x128xf32> -> vector<8x128xf32>
    %c0_10 = arith.constant 0 : index
    %c0_11 = arith.constant 0 : index
    %15 = vector.load %arg6[%c0_10, %c0_11] : memref<1x128xf32, #tpu.memory_space<vmem>>, vector<1x128xf32>
    %16 = vector.broadcast %15 : vector<1x128xf32> to vector<8x128xf32>
    %17 = arith.addf %14, %16 : vector<8x128xf32>
    %cst_12 = arith.constant 0.000000e+00 : f32
    %18 = vector.broadcast %cst_12 : f32 to vector<8x128xf32>
    %19 = arith.cmpf ogt, %17, %18 : vector<8x128xf32>
    %20 = vector.broadcast %1 : f32 to vector<8x128xf32>
    %21 = arith.mulf %20, %17 : vector<8x128xf32>
    %22 = arith.select %19, %17, %21 : vector<8x128xi1>, vector<8x128xf32>
    %c0_13 = arith.constant 0 : index
    %c0_14 = arith.constant 0 : index
    %23 = vector.load %arg7[%c0_13, %c0_14] : memref<128x4xf32, #tpu.memory_space<vmem>>, vector<128x4xf32>
    %cst_15 = arith.constant dense<0.000000e+00> : vector<8x4xf32>
    %24 = tpu.matmul %22, %23, %cst_15 {dimension_numbers = #tpu.dot_dimension_numbers<[1], [0], [0], [1], [0, 0, 1, 1], [], []>} : vector<8x128xf32>, vector<128x4xf32>, vector<8x4xf32> -> vector<8x4xf32>
    %c0_16 = arith.constant 0 : index
    %c0_17 = arith.constant 0 : index
    %25 = vector.load %arg8[%c0_16, %c0_17] : memref<1x4xf32, #tpu.memory_space<vmem>>, vector<1x4xf32>
    %26 = vector.broadcast %25 : vector<1x4xf32> to vector<8x4xf32>
    %27 = arith.addf %24, %26 : vector<8x4xf32>
    %c0_18 = arith.constant 0 : index
    %c0_19 = arith.constant 0 : index
    %28 = vector.load %arg9[%c0_18, %c0_19] : memref<8x4xf32, #tpu.memory_space<vmem>>, vector<8x4xf32>
    tpu.vector_store %arg9[%c0_18, %c0_19], %27 {strides = array<i32>} : memref<8x4xf32, #tpu.memory_space<vmem>>, vector<8x4xf32>,
    return
  }
  func.func @transform_0(%arg0: i32) -> i32 {
    %c0_i32 = arith.constant 0 : i32
    %c0_i32_0 = arith.constant 0 : i32
    return %c0_i32 : i32
  }
  func.func @transform_1(%arg0: i32) -> (i32, i32) {
    %c0_i32 = arith.constant 0 : i32
    %c0_i32_0 = arith.constant 0 : i32
    return %arg0, %c0_i32 : i32, i32
  }
  func.func @transform_2(%arg0: i32) -> (i32, i32) {
    %c0_i32 = arith.constant 0 : i32
    %c0_i32_0 = arith.constant 0 : i32
    %c0_i32_1 = arith.constant 0 : i32
    return %c0_i32, %c0_i32_0 : i32, i32
  }
  func.func @transform_3(%arg0: i32) -> (i32, i32) {
    %c0_i32 = arith.constant 0 : i32
    %c0_i32_0 = arith.constant 0 : i32
    %c0_i32_1 = arith.constant 0 : i32
    return %c0_i32, %c0_i32_0 : i32, i32
  }
  func.func @transform_4(%arg0: i32) -> (i32, i32) {
    %c0_i32 = arith.constant 0 : i32
    %c0_i32_0 = arith.constant 0 : i32
    %c0_i32_1 = arith.constant 0 : i32
    return %c0_i32, %c0_i32_0 : i32, i32
  }
  func.func @transform_5(%arg0: i32) -> (i32, i32) {
    %c0_i32 = arith.constant 0 : i32
    %c0_i32_0 = arith.constant 0 : i32
    %c0_i32_1 = arith.constant 0 : i32
    return %c0_i32, %c0_i32_0 : i32, i32
  }
  func.func @transform_6(%arg0: i32) -> (i32, i32) {
    %c0_i32 = arith.constant 0 : i32
    %c0_i32_0 = arith.constant 0 : i32
    %c0_i32_1 = arith.constant 0 : i32
    return %c0_i32, %c0_i32_0 : i32, i32
  }
  func.func @transform_7(%arg0: i32) -> (i32, i32) {
    %c0_i32 = arith.constant 0 : i32
    %c0_i32_0 = arith.constant 0 : i32
    %c0_i32_1 = arith.constant 0 : i32
    return %c0_i32, %c0_i32_0 : i32, i32
  }
  func.func @transform_8(%arg0: i32) -> (i32, i32) {
    %c0_i32 = arith.constant 0 : i32
    %c0_i32_0 = arith.constant 0 : i32
    return %arg0, %c0_i32 : i32, i32
  }
}

</mosaic_0001>

<llo_original>
// kernel: tpu_custom_call.1
$region0: #{tpu_custom_call.1}
  #allocation0 [shape = 'u32[]', space=smem, size = 0x4, offset = 0x4, fixed_abs, tag = 'smem constant byte address 0x4 - core index']
  #allocation1 [shape = 'u32[144,128]{1,0:T(1,128)}', space=vmem, size = 0x12000, scoped, tag = 'internal scratch']
  %s0 = inlined_call_operand.vmem [shape: f32[2], index: 0, kind: input, shape index: {}]
  %s1 = inlined_call_operand.vmem [shape: f32[8,8], index: 1, kind: input, shape index: {}]
  %s2 = inlined_call_operand.hbm [shape: f32[8,128], index: 2, kind: input, shape index: {}]
  %s3 = inlined_call_operand.hbm [shape: f32[1,128], index: 3, kind: input, shape index: {}]
  %s4 = inlined_call_operand.vmem [shape: f32[128,128], index: 4, kind: input, shape index: {}]
  %s5 = inlined_call_operand.hbm [shape: f32[1,128], index: 5, kind: input, shape index: {}]
  %s6 = inlined_call_operand.vmem [shape: f32[128,4], index: 6, kind: input, shape index: {}]
  %s7 = inlined_call_operand.vmem [shape: f32[1,4], index: 7, kind: input, shape index: {}]
  %s8 = inlined_call_operand.vmem [shape: f32[8,4], index: 8, kind: output, shape index: {}]
  %s9 = sld [smem:[#allocation0]]
  $region58: #{tpu_custom_call.1} parent=0
    _
  %s11 = ssub.s32 1, %s9
  %s12 = scalar_select 0, %s11, %s9
  $region1: #{tpu_custom_call.1} parent=0
    #allocation2 [shape = 'u8[512]{0}', space=smem, size = 0x200, scoped, tag = 'input window, operand 0, single buffered']
    #allocation3 [shape = 's32[1]{0}', space=sflag, size = 0x4, scoped, tag = 'scoped memory for tpu_custom_call.1']
    #allocation4 [shape = 's32[1]{0}', space=sflag, size = 0x4, scoped, tag = 'scoped memory for tpu_custom_call.1']
    #allocation5 [shape = 'u8[4096]{0}', space=vmem, size = 0x1000, scoped, tag = 'input window, operand 2, single buffered']
    #allocation6 [shape = 'u8[512]{0}', space=vmem, size = 0x400, scoped, tag = 'input window, operand 3, single buffered']
    #allocation7 [shape = 's32[1]{0}', space=sflag, size = 0x4, scoped, tag = 'scoped memory for tpu_custom_call.1']
    #allocation8 [shape = 'u8[512]{0}', space=vmem, size = 0x400, scoped, tag = 'input window, operand 5, single buffered']
    %13 = vsyncpa [#allocation4], 0
    %14 = vsyncpa [#allocation3], 0
    %15 = vsyncpa [#allocation7], 0
    // Predicated region
    $region2: #{tpu_custom_call.1} parent=1 // pred_check
      _
    $region3: #{tpu_custom_call.1} parent=1 // pred_check_branch
      %17 = sbr.rel (0) target = $region5
    $region4: #{tpu_custom_call.1} parent=1 // pred_region
      %s19 = ssub.s32 16, 16
      %20 = vsyncadd [#allocation4], %s19
      %s22 = sshll.u32 %s0, 4
      %s23 = int_to_ptr.vmem [resolvable:$true] %s22
      %25 = dma.vmem_to_smem %s23, 16, [#allocation2], [#allocation4]
    $region5: #{tpu_custom_call.1} parent=1 // pred_fallthru
      _
    // Predicated region
    $region6: #{tpu_custom_call.1} parent=1 // pred_check
      _
    $region7: #{tpu_custom_call.1} parent=1 // pred_check_branch
      %27 = sbr.rel (0) target = $region9
    $region8: #{tpu_custom_call.1} parent=1 // pred_region
      _
    $region9: #{tpu_custom_call.1} parent=1 // pred_fallthru
      _
    // Predicated region
    $region10: #{tpu_custom_call.1} parent=1 // pred_check
      _
    $region11: #{tpu_custom_call.1} parent=1 // pred_check_branch
      %29 = sbr.rel (0) target = $region13
    $region12: #{tpu_custom_call.1} parent=1 // pred_region
      %s31 = ssub.s32 128, 128
      %32 = vsyncadd [#allocation3], %s31
      %s34 = sshll.u32 [#allocation5], 4
      %s35 = int_to_ptr.vmem [resolvable:$true] %s34
      %37 = dma.hbm_to_vmem [thread:$0]  %s2, 128, %s35, [#allocation3]
    $region13: #{tpu_custom_call.1} parent=1 // pred_fallthru
      _
    // Predicated region
    $region14: #{tpu_custom_call.1} parent=1 // pred_check
      _
    $region15: #{tpu_custom_call.1} parent=1 // pred_check_branch
      %39 = sbr.rel (0) target = $region17
    $region16: #{tpu_custom_call.1} parent=1 // pred_region
      %s41 = ssub.s32 16, 16
      %42 = vsyncadd [#allocation7], %s41
      %s44 = sshll.u32 [#allocation6], 4
      %s45 = int_to_ptr.vmem [resolvable:$true] %s44
      %47 = dma.hbm_to_vmem [thread:$0]  %s3, 16, %s45, [#allocation7]
    $region17: #{tpu_custom_call.1} parent=1 // pred_fallthru
      _
    // Predicated region
    $region18: #{tpu_custom_call.1} parent=1 // pred_check
      _
    $region19: #{tpu_custom_call.1} parent=1 // pred_check_branch
      %49 = sbr.rel (0) target = $region21
    $region20: #{tpu_custom_call.1} parent=1 // pred_region
      _
    $region21: #{tpu_custom_call.1} parent=1 // pred_fallthru
      _
    // Predicated region
    $region22: #{tpu_custom_call.1} parent=1 // pred_check
      _
    $region23: #{tpu_custom_call.1} parent=1 // pred_check_branch
      %51 = sbr.rel (0) target = $region25
    $region24: #{tpu_custom_call.1} parent=1 // pred_region
      %s53 = ssub.s32 16, 16
      %54 = vsyncadd [#allocation7], %s53
      %s56 = sshll.u32 [#allocation8], 4
      %s57 = int_to_ptr.vmem [resolvable:$true] %s56
      %59 = dma.hbm_to_vmem [thread:$0]  %s5, 16, %s57, [#allocation7]
    $region25: #{tpu_custom_call.1} parent=1 // pred_fallthru
      _
    // Predicated region
    $region26: #{tpu_custom_call.1} parent=1 // pred_check
      _
    $region27: #{tpu_custom_call.1} parent=1 // pred_check_branch
      %61 = sbr.rel (0) target = $region29
    $region28: #{tpu_custom_call.1} parent=1 // pred_region
      _
    $region29: #{tpu_custom_call.1} parent=1 // pred_fallthru
      _
    // Predicated region
    $region30: #{tpu_custom_call.1} parent=1 // pred_check
      _
    $region31: #{tpu_custom_call.1} parent=1 // pred_check_branch
      %63 = sbr.rel (0) target = $region33
    $region32: #{tpu_custom_call.1} parent=1 // pred_region
      _
    $region33: #{tpu_custom_call.1} parent=1 // pred_fallthru
      _
    // Predicated region
    $region34: #{tpu_custom_call.1} parent=1 // pred_check
      _
    $region35: #{tpu_custom_call.1} parent=1 // pred_check_branch
      %65 = sbr.rel (0) target = $region37
    $region36: #{tpu_custom_call.1} parent=1 // pred_region
      %66 = dma.done [#allocation4], 16
    $region37: #{tpu_custom_call.1} parent=1 // pred_fallthru
      _
    // Predicated region
    $region38: #{tpu_custom_call.1} parent=1 // pred_check
      _
    $region39: #{tpu_custom_call.1} parent=1 // pred_check_branch
      %68 = sbr.rel (0) target = $region41
    $region40: #{tpu_custom_call.1} parent=1 // pred_region
      %69 = dma.done [#allocation3], 128
    $region41: #{tpu_custom_call.1} parent=1 // pred_fallthru
      _
    // Predicated region
    $region42: #{tpu_custom_call.1} parent=1 // pred_check
      _
    $region43: #{tpu_custom_call.1} parent=1 // pred_check_branch
      %71 = sbr.rel (0) target = $region45
    $region44: #{tpu_custom_call.1} parent=1 // pred_region
      %72 = dma.done [#allocation7], 16
    $region45: #{tpu_custom_call.1} parent=1 // pred_fallthru
      _
    // Predicated region
    $region46: #{tpu_custom_call.1} parent=1 // pred_check
      _
    $region47: #{tpu_custom_call.1} parent=1 // pred_check_branch
      %74 = sbr.rel (0) target = $region49
    $region48: #{tpu_custom_call.1} parent=1 // pred_region
      %75 = dma.done [#allocation7], 16
    $region49: #{tpu_custom_call.1} parent=1 // pred_fallthru
      _
    %76 = sfence
    %s77 = sld [smem:[#allocation2]]
    %s78 = sld [smem:[#allocation2 + $0x1]]
    %v79 = vld [vmem:[%s1] sm:$0xff]
    %v80 = vld [vmem:[#allocation5] sm:$0xff]
    %v81 = vld [vmem:[#allocation6] sm:$0x1]
    %v83 = vlaneseq
    %v84 = vshrl.u32 %v83, 7
    %v85 = vsub.s32 0, %v84
    %v86 = vrot.slane %v81, %v85
    %vm88 = vcmask 64512
    %v90 = vsel %vm88, %v79, 0
    %92 = vmatprep.subr.mxu0 0.0
    %93 = vmatpush1.msra.mxu0 0.0
    %94 = vmatprep.subr.mxu0 0.0
    %95 = vmatpush1.msra.mxu0 0.0
    %96 = vmatprep.subr.mxu0 0.0
    %97 = vmatpush1.msra.mxu0 0.0
    %98 = vmatprep.subr.mxu0 0.0
    %99 = vmatpush1.msra.mxu0 0.0
    %100 = vmatprep.subr.mxu0 0.0
    %101 = vmatpush1.msra.mxu0 0.0
    %102 = vmatprep.subr.mxu0 0.0
    %103 = vmatpush1.msra.mxu0 0.0
    %104 = vmatprep.subr.mxu0 0.0
    %105 = vmatpush1.msra.mxu0 0.0
    %106 = vmatprep.subr.mxu0 0.0
    %107 = vmatpush1.msra.mxu0 0.0
    %108 = vmatprep.subr.mxu0 0.0
    %109 = vmatpush1.msra.mxu0 0.0
    %110 = vmatprep.subr.mxu0 0.0
    %111 = vmatpush1.msra.mxu0 0.0
    %112 = vmatprep.subr.mxu0 0.0
    %113 = vmatpush1.msra.mxu0 0.0
    %114 = vmatprep.subr.mxu0 0.0
    %115 = vmatpush1.msra.mxu0 0.0
    %116 = vmatprep.subr.mxu0 0.0
    %117 = vmatpush1.msra.mxu0 0.0
    %118 = vmatprep.subr.mxu0 0.0
    %119 = vmatpush1.msra.mxu0 0.0
    %120 = vmatprep.subr.mxu0 0.0
    %121 = vmatpush1.msra.mxu0 0.0
    %122 = vmatprep.subr.mxu0 0.0
    %123 = vmatpush1.msra.mxu0 %v80
    %124 = vmatprep.subr.mxu0 0.0
    %125 = vmatpush2.msra.mxu0 0.0
    %126 = vmatprep.subr.mxu0 0.0
    %127 = vmatpush2.msra.mxu0 0.0
    %128 = vmatprep.subr.mxu0 0.0
    %129 = vmatpush2.msra.mxu0 0.0
    %130 = vmatprep.subr.mxu0 0.0
    %131 = vmatpush2.msra.mxu0 0.0
    %132 = vmatprep.subr.mxu0 0.0
    %133 = vmatpush2.msra.mxu0 0.0
    %134 = vmatprep.subr.mxu0 0.0
    %135 = vmatpush2.msra.mxu0 0.0
    %136 = vmatprep.subr.mxu0 0.0
    %137 = vmatpush2.msra.mxu0 0.0
    %138 = vmatprep.subr.mxu0 0.0
    %139 = vmatpush2.msra.mxu0 0.0
    %140 = vmatprep.subr.mxu0 0.0
    %141 = vmatpush2.msra.mxu0 0.0
    %142 = vmatprep.subr.mxu0 0.0
    %143 = vmatpush2.msra.mxu0 0.0
    %144 = vmatprep.subr.mxu0 0.0
    %145 = vmatpush2.msra.mxu0 0.0
    %146 = vmatprep.subr.mxu0 0.0
    %147 = vmatpush2.msra.mxu0 0.0
    %148 = vmatprep.subr.mxu0 0.0
    %149 = vmatpush2.msra.mxu0 0.0
    %150 = vmatprep.subr.mxu0 0.0
    %151 = vmatpush2.msra.mxu0 0.0
    %152 = vmatprep.subr.mxu0 0.0
    %153 = vmatpush2.msra.mxu0 0.0
    %154 = vmatprep.subr.mxu0 0.0
    %155 = vmatpush2.msra.mxu0 0.0
    %156 = vmatprep.mubr.f32.mxu0 0.0
    %157 = vmatmul.mubr.f32.gmra.mxu0 %v90
    %v158 = vpop.f32.mrf.mxu0
    %v159 = vadd.f32 %v86, %v158
    %v160 = vpop.f32.mrf.mxu0
    %161 = vdwg.mxu0
    %vm162 = vcmp.gt.f32.partialorder %v159, 0.0
    %v163 = vstv %s77
    %v164 = vmul.f32 %v163, %v159
    %v165 = vsel %vm162, %v159, %v164
    %v166 = vld [vmem:[%s4] sm:$0xff]
    %v167 = vld [vmem:[%s4 + $0x8] sm:$0xff]
    %v168 = vld [vmem:[%s4 + $0x10] sm:$0xff]
    %v169 = vld [vmem:[%s4 + $0x18] sm:$0xff]
    %v170 = vld [vmem:[%s4 + $0x20] sm:$0xff]
    %v171 = vld [vmem:[%s4 + $0x28] sm:$0xff]
    %v172 = vld [vmem:[%s4 + $0x30] sm:$0xff]
    %v173 = vld [vmem:[%s4 + $0x38] sm:$0xff]
    %v174 = vld [vmem:[%s4 + $0x40] sm:$0xff]
    %v175 = vld [vmem:[%s4 + $0x48] sm:$0xff]
    %v176 = vld [vmem:[%s4 + $0x50] sm:$0xff]
    %v177 = vld [vmem:[%s4 + $0x58] sm:$0xff]
    %v178 = vld [vmem:[%s4 + $0x60] sm:$0xff]
    %v179 = vld [vmem:[%s4 + $0x68] sm:$0xff]
    %v180 = vld [vmem:[%s4 + $0x70] sm:$0xff]
    %v181 = vld [vmem:[%s4 + $0x78] sm:$0xff]
    %v182 = vld [vmem:[#allocation8] sm:$0x1]
    %v184 = vlaneseq
    %v185 = vshrl.u32 %v184, 7
    %v186 = vsub.s32 0, %v185
    %v187 = vrot.slane %v182, %v186
    %189 = vmatprep.subr.mxu0 0.0
    %190 = vmatpush1.msra.mxu0 %v181
    %191 = vmatprep.subr.mxu0 0.0
    %192 = vmatpush1.msra.mxu0 %v180
    %193 = vmatprep.subr.mxu0 0.0
    %194 = vmatpush1.msra.mxu0 %v179
    %195 = vmatprep.subr.mxu0 0.0
    %196 = vmatpush1.msra.mxu0 %v178
    %197 = vmatprep.subr.mxu0 0.0
    %198 = vmatpush1.msra.mxu0 %v177
    %199 = vmatprep.subr.mxu0 0.0
    %200 = vmatpush1.msra.mxu0 %v176
    %201 = vmatprep.subr.mxu0 0.0
    %202 = vmatpush1.msra.mxu0 %v175
    %203 = vmatprep.subr.mxu0 0.0
    %204 = vmatpush1.msra.mxu0 %v174
    %205 = vmatprep.subr.mxu0 0.0
    %206 = vmatpush1.msra.mxu0 %v173
    %207 = vmatprep.subr.mxu0 0.0
    %208 = vmatpush1.msra.mxu0 %v172
    %209 = vmatprep.subr.mxu0 0.0
    %210 = vmatpush1.msra.mxu0 %v171
    %211 = vmatprep.subr.mxu0 0.0
    %212 = vmatpush1.msra.mxu0 %v170
    %213 = vmatprep.subr.mxu0 0.0
    %214 = vmatpush1.msra.mxu0 %v169
    %215 = vmatprep.subr.mxu0 0.0
    %216 = vmatpush1.msra.mxu0 %v168
    %217 = vmatprep.subr.mxu0 0.0
    %218 = vmatpush1.msra.mxu0 %v167
    %219 = vmatprep.subr.mxu0 0.0
    %220 = vmatpush1.msra.mxu0 %v166
    %221 = vmatprep.subr.mxu0 0.0
    %222 = vmatpush2.msra.mxu0 0.0
    %223 = vmatprep.subr.mxu0 0.0
    %224 = vmatpush2.msra.mxu0 0.0
    %225 = vmatprep.subr.mxu0 0.0
    %226 = vmatpush2.msra.mxu0 0.0
    %227 = vmatprep.subr.mxu0 0.0
    %228 = vmatpush2.msra.mxu0 0.0
    %229 = vmatprep.subr.mxu0 0.0
    %230 = vmatpush2.msra.mxu0 0.0
    %231 = vmatprep.subr.mxu0 0.0
    %232 = vmatpush2.msra.mxu0 0.0
    %233 = vmatprep.subr.mxu0 0.0
    %234 = vmatpush2.msra.mxu0 0.0
    %235 = vmatprep.subr.mxu0 0.0
    %236 = vmatpush2.msra.mxu0 0.0
    %237 = vmatprep.subr.mxu0 0.0
    %238 = vmatpush2.msra.mxu0 0.0
    %239 = vmatprep.subr.mxu0 0.0
    %240 = vmatpush2.msra.mxu0 0.0
    %241 = vmatprep.subr.mxu0 0.0
    %242 = vmatpush2.msra.mxu0 0.0
    %243 = vmatprep.subr.mxu0 0.0
    %244 = vmatpush2.msra.mxu0 0.0
    %245 = vmatprep.subr.mxu0 0.0
    %246 = vmatpush2.msra.mxu0 0.0
    %247 = vmatprep.subr.mxu0 0.0
    %248 = vmatpush2.msra.mxu0 0.0
    %249 = vmatprep.subr.mxu0 0.0
    %250 = vmatpush2.msra.mxu0 0.0
    %251 = vmatprep.subr.mxu0 0.0
    %252 = vmatpush2.msra.mxu0 0.0
    %253 = vmatprep.mubr.f32.mxu0 0.0
    %254 = vmatmul.mubr.f32.gmra.mxu0 %v165
    %v255 = vpop.f32.mrf.mxu0
    %v256 = vadd.f32 %v187, %v255
    %v257 = vpop.f32.mrf.mxu0
    %258 = vdwg.mxu0
    %vm259 = vcmp.gt.f32.partialorder %v256, 0.0
    %v260 = vstv %s78
    %v261 = vmul.f32 %v260, %v256
    %v262 = vsel %vm259, %v256, %v261
    %v263 = vld [vmem:[%s6] sm:$0xff]
    %v264 = vld [vmem:[%s6 + $0x8] sm:$0xff]
    %v265 = vld [vmem:[%s6 + $0x10] sm:$0xff]
    %v266 = vld [vmem:[%s6 + $0x18] sm:$0xff]
    %v267 = vld [vmem:[%s6 + $0x20] sm:$0xff]
    %v268 = vld [vmem:[%s6 + $0x28] sm:$0xff]
    %v269 = vld [vmem:[%s6 + $0x30] sm:$0xff]
    %v270 = vld [vmem:[%s6 + $0x38] sm:$0xff]
    %v271 = vld [vmem:[%s6 + $0x40] sm:$0xff]
    %v272 = vld [vmem:[%s6 + $0x48] sm:$0xff]
    %v273 = vld [vmem:[%s6 + $0x50] sm:$0xff]
    %v274 = vld [vmem:[%s6 + $0x58] sm:$0xff]
    %v275 = vld [vmem:[%s6 + $0x60] sm:$0xff]
    %v276 = vld [vmem:[%s6 + $0x68] sm:$0xff]
    %v277 = vld [vmem:[%s6 + $0x70] sm:$0xff]
    %v278 = vld [vmem:[%s6 + $0x78] sm:$0xff]
    %v279 = vld [vmem:[%s7] sm:$0x1]
    %v281 = vlaneseq
    %v282 = vshrl.u32 %v281, 7
    %v283 = vsub.s32 0, %v282
    %v284 = vrot.slane %v279, %v283
    %286 = vmatprep.subr.mxu0 0.0
    %287 = vmatpush1.msra.mxu0 %v278
    %288 = vmatprep.subr.mxu0 0.0
    %289 = vmatpush1.msra.mxu0 %v277
    %290 = vmatprep.subr.mxu0 0.0
    %291 = vmatpush1.msra.mxu0 %v276
    %292 = vmatprep.subr.mxu0 0.0
    %293 = vmatpush1.msra.mxu0 %v275
    %294 = vmatprep.subr.mxu0 0.0
    %295 = vmatpush1.msra.mxu0 %v274
    %296 = vmatprep.subr.mxu0 0.0
    %297 = vmatpush1.msra.mxu0 %v273
    %298 = vmatprep.subr.mxu0 0.0
    %299 = vmatpush1.msra.mxu0 %v272
    %300 = vmatprep.subr.mxu0 0.0
    %301 = vmatpush1.msra.mxu0 %v271
    %302 = vmatprep.subr.mxu0 0.0
    %303 = vmatpush1.msra.mxu0 %v270
    %304 = vmatprep.subr.mxu0 0.0
    %305 = vmatpush1.msra.mxu0 %v269
    %306 = vmatprep.subr.mxu0 0.0
    %307 = vmatpush1.msra.mxu0 %v268
    %308 = vmatprep.subr.mxu0 0.0
    %309 = vmatpush1.msra.mxu0 %v267
    %310 = vmatprep.subr.mxu0 0.0
    %311 = vmatpush1.msra.mxu0 %v266
    %312 = vmatprep.subr.mxu0 0.0
    %313 = vmatpush1.msra.mxu0 %v265
    %314 = vmatprep.subr.mxu0 0.0
    %315 = vmatpush1.msra.mxu0 %v264
    %316 = vmatprep.subr.mxu0 0.0
    %317 = vmatpush1.msra.mxu0 %v263
    %318 = vmatprep.subr.mxu0 0.0
    %319 = vmatpush2.msra.mxu0 0.0
    %320 = vmatprep.subr.mxu0 0.0
    %321 = vmatpush2.msra.mxu0 0.0
    %322 = vmatprep.subr.mxu0 0.0
    %323 = vmatpush2.msra.mxu0 0.0
    %324 = vmatprep.subr.mxu0 0.0
    %325 = vmatpush2.msra.mxu0 0.0
    %326 = vmatprep.subr.mxu0 0.0
    %327 = vmatpush2.msra.mxu0 0.0
    %328 = vmatprep.subr.mxu0 0.0
    %329 = vmatpush2.msra.mxu0 0.0
    %330 = vmatprep.subr.mxu0 0.0
    %331 = vmatpush2.msra.mxu0 0.0
    %332 = vmatprep.subr.mxu0 0.0
    %333 = vmatpush2.msra.mxu0 0.0
    %334 = vmatprep.subr.mxu0 0.0
    %335 = vmatpush2.msra.mxu0 0.0
    %336 = vmatprep.subr.mxu0 0.0
    %337 = vmatpush2.msra.mxu0 0.0
    %338 = vmatprep.subr.mxu0 0.0
    %339 = vmatpush2.msra.mxu0 0.0
    %340 = vmatprep.subr.mxu0 0.0
    %341 = vmatpush2.msra.mxu0 0.0
    %342 = vmatprep.subr.mxu0 0.0
    %343 = vmatpush2.msra.mxu0 0.0
    %344 = vmatprep.subr.mxu0 0.0
    %345 = vmatpush2.msra.mxu0 0.0
    %346 = vmatprep.subr.mxu0 0.0
    %347 = vmatpush2.msra.mxu0 0.0
    %348 = vmatprep.subr.mxu0 0.0
    %349 = vmatpush2.msra.mxu0 0.0
    %350 = vmatprep.mubr.f32.mxu0 0.0
    %351 = vmatmul.mubr.f32.gmra.mxu0 %v262
    %v352 = vpop.f32.mrf.mxu0
    %v353 = vadd.f32 %v284, %v352
    %v354 = vpop.f32.mrf.mxu0
    %355 = vdwg.mxu0
    %vm356 = vcmask 31744
    %357 = vst.msk [vmem:[%s8] sm:$0xff] %vm356, %v353
    // Predicated region
    $region50: #{tpu_custom_call.1} parent=1 // pred_check
      _
    $region51: #{tpu_custom_call.1} parent=1 // pred_check_branch
      %359 = sbr.rel (0) target = $region53
    $region52: #{tpu_custom_call.1} parent=1 // pred_region
      _
    $region53: #{tpu_custom_call.1} parent=1 // pred_fallthru
      _
    // Predicated region
    $region54: #{tpu_custom_call.1} parent=1 // pred_check
      _
    $region55: #{tpu_custom_call.1} parent=1 // pred_check_branch
      %361 = sbr.rel (0) target = $region57
    $region56: #{tpu_custom_call.1} parent=1 // pred_region
      _
    $region57: #{tpu_custom_call.1} parent=1 // pred_fallthru
      _
    %362 = vsyncpa [#allocation3], 1
    %363 = vsyncpa [#allocation7], 1
    %364 = vsyncpa [#allocation4], 1

</llo_original>
